<compile_context>
chip_gen: v5e
topology: v5e:2x2
jax: 0.10.0
libtpu: 0.0.40
codegen_flags: <defaults>
</compile_context>

<pallas_src>
import jax
import jax.numpy as jnp
from jax.experimental import pallas as pl
from jax.experimental.pallas import tpu as pltpu

HIDDEN_SIZE = 256
MAX_DEADLINE = 10
NUM_OF_LINKS = 6
N_STATES = NUM_OF_LINKS * (MAX_DEADLINE + 3)
IN_DIM = N_STATES + 1          # 79


def critic_kernel(x_ref, w1_ref, b1_ref, w2_ref, b2_ref, w3_ref, b3_ref, out_ref):
    # Layer 1: (TM, 79) bf16 @ (79, 256) bf16 -> f32 acc, + bias, ReLU.
    x = x_ref[...].astype(jnp.bfloat16)
    h1 = jnp.dot(x, w1_ref[...], preferred_element_type=jnp.float32)
    h1 = jnp.maximum(h1 + b1_ref[...], 0.0)
    # Layer 2: (TM, 256) bf16 @ (256, 256) bf16 -> f32 acc, + bias, ReLU.
    h2 = jnp.dot(h1.astype(jnp.bfloat16), w2_ref[...],
                 preferred_element_type=jnp.float32)
    h2 = jnp.maximum(h2 + b2_ref[...], 0.0)
    # Value head as a "B-transposed" matmul (flash-attention q@k^T dim numbers):
    # (1, 256) bf16 x (TM, 256)^T bf16 -> (1, TM) f32 -- already lane-dense for the store.
    v_row = jax.lax.dot_general(
        w3_ref[...], h2.astype(jnp.bfloat16),
        dimension_numbers=(((1,), (1,)), ((), ())),
        preferred_element_type=jnp.float32)
    out_ref[...] = (v_row + b3_ref[0, 0]).astype(out_ref.dtype)


def init_params(key):
    """Deterministic init mirroring the PyTorch module:
       weights ~ N(0, 0.02); biases keep nn.Linear's default U(-1/sqrt(fan_in), +1/sqrt(fan_in)).
       Weights stored as (in, out) = W.T so the forward is x @ W."""
    k1, k2, k3, kb1, kb2, kb3 = jax.random.split(key, 6)
    w1 = 0.02 * jax.random.normal(k1, (IN_DIM, HIDDEN_SIZE), jnp.float32)
    w2 = 0.02 * jax.random.normal(k2, (HIDDEN_SIZE, HIDDEN_SIZE), jnp.float32)
    w3 = 0.02 * jax.random.normal(k3, (HIDDEN_SIZE, 1), jnp.float32)
    b1 = jax.random.uniform(kb1, (1, HIDDEN_SIZE), jnp.float32,
                            minval=-1.0 / jnp.sqrt(IN_DIM), maxval=1.0 / jnp.sqrt(IN_DIM))
    b2 = jax.random.uniform(kb2, (1, HIDDEN_SIZE), jnp.float32,
                            minval=-1.0 / jnp.sqrt(HIDDEN_SIZE), maxval=1.0 / jnp.sqrt(HIDDEN_SIZE))
    b3 = jax.random.uniform(kb3, (1, 1), jnp.float32,
                            minval=-1.0 / jnp.sqrt(HIDDEN_SIZE), maxval=1.0 / jnp.sqrt(HIDDEN_SIZE))
    return (w1, b1, w2, b2, w3, b3)


def prepare_params(params):
    """One-time conversion: cast matmul weights to bf16 (f32 accumulation stays in-kernel),
       reshape the value head to a (1, 256) row, keep the b3 scalar as (1, 1) for SMEM."""
    w1, b1, w2, b2, w3, b3 = params
    return (
        w1.astype(jnp.bfloat16),                              # (79, 256)  bf16
        b1.astype(jnp.float32),                               # (1, 256)   f32
        w2.astype(jnp.bfloat16),                              # (256, 256) bf16
        b2.astype(jnp.float32),                               # (1, 256)   f32
        w3.reshape(1, HIDDEN_SIZE).astype(jnp.bfloat16),      # (1, 256)   bf16 value row
        b3.reshape(1, 1).astype(jnp.float32),                 # (1, 1)     f32 -> SMEM
    )


def _round_up(n, m):
    return ((n + m - 1) // m) * m


def critic_forward(x, prepared_params, *, tm_max=2048):
    """x: (B, 79) f32.  Returns (B, 1) f32 state values."""
    w1, b1, w2, b2, w3row, b3 = prepared_params
    B, d = x.shape
    assert d == IN_DIM, d

    # Tile selection: fewest ~tm_max-row tiles, rounded to 128 rows (keeps the lane-dense
    # output block 128-aligned).  Medium/large batches use >= 2 tiles so that on v7x both
    # TensorCores get a tile; the extra grid step is negligible on single-TC v5e/v6e.
    num_tiles = max(1, pl.cdiv(B, tm_max))
    if num_tiles == 1 and B >= 512:
        num_tiles = 2
    TM = _round_up(pl.cdiv(B, num_tiles), 128)
    Bp = num_tiles * TM

    # Only a (small) batch pad; no lane pad / dtype cast materialized in the wrapper.
    xp = x if Bp == B else jnp.pad(x, ((0, Bp - B), (0, 0)))

    flops = 2 * Bp * (IN_DIM * HIDDEN_SIZE + HIDDEN_SIZE * HIDDEN_SIZE + HIDDEN_SIZE)
    bytes_accessed = (xp.size * 4 + (w1.size + w2.size + w3row.size) * 2
                      + (b1.size + b2.size + b3.size) * 4 + Bp * 4)

    # TODO(synk): for the full ensemble-Q training step, stack E critics' weights as
    # (E, in, out) and add a leading "parallel" grid axis over E so the whole ensemble runs
    # in one pallas_call (amortizes dispatch + pipeline warm-up E-fold).
    out_row = pl.pallas_call(
        critic_kernel,
        out_shape=jax.ShapeDtypeStruct((1, Bp), jnp.float32),
        grid=(num_tiles,),
        in_specs=[
            pl.BlockSpec((TM, IN_DIM), lambda i: (i, 0)),                # x tile (pipelined)
            pl.BlockSpec((IN_DIM, HIDDEN_SIZE), lambda i: (0, 0)),       # w1 (VMEM-resident)
            pl.BlockSpec((1, HIDDEN_SIZE), lambda i: (0, 0)),            # b1
            pl.BlockSpec((HIDDEN_SIZE, HIDDEN_SIZE), lambda i: (0, 0)),  # w2 (VMEM-resident)
            pl.BlockSpec((1, HIDDEN_SIZE), lambda i: (0, 0)),            # b2
            pl.BlockSpec((1, HIDDEN_SIZE), lambda i: (0, 0)),            # w3 row
            pl.BlockSpec(memory_space=pltpu.SMEM),                       # b3 scalar in SMEM
        ],
        out_specs=pl.BlockSpec((1, TM), lambda i: (0, i)),               # lane-dense value row
        compiler_params=pltpu.CompilerParams(
            dimension_semantics=("parallel",),           # shard batch tiles across TCs (v7x)
            vmem_limit_bytes=32 * 1024 * 1024),          # ~10 MiB live at TM=2048; headroom
        cost_estimate=pl.CostEstimate(
            flops=flops, transcendentals=0, bytes_accessed=bytes_accessed),
    )(xp, w1, b1, w2, b2, w3row, b3)
    return out_row[0, :B][:, None]


def critic_ref_f32(x, params):
    """Pure-f32 JAX reference of the PyTorch forward (exact module semantics)."""
    w1, b1, w2, b2, w3, b3 = params
    h1 = jnp.maximum(x @ w1 + b1, 0.0)
    h2 = jnp.maximum(h1 @ w2 + b2, 0.0)
    return h2 @ w3 + b3


def critic_ref_bf16(x, prepared_params):
    """Reference with the same bf16-weight / f32-accumulate precision split as the kernel."""
    w1, b1, w2, b2, w3row, b3 = prepared_params
    h1 = jnp.maximum(jnp.dot(x.astype(jnp.bfloat16), w1,
                             preferred_element_type=jnp.float32) + b1, 0.0)
    h2 = jnp.maximum(jnp.dot(h1.astype(jnp.bfloat16), w2,
                             preferred_element_type=jnp.float32) + b2, 0.0)
    v = jax.lax.dot_general(h2.astype(jnp.bfloat16), w3row,
                            dimension_numbers=(((1,), (1,)), ((), ())),
                            preferred_element_type=jnp.float32)
    return v + b3[0, 0]


if __name__ == "__main__":
    key = jax.random.PRNGKey(0)
    kp, kx, kx2 = jax.random.split(key, 3)
    params = init_params(kp)
    prepared = prepare_params(params)

    # Small batch: state (78 dims) + action (1 dim) -> single tile.
    batch = 8
    x = jax.random.normal(kx, (batch, IN_DIM), jnp.float32)
    out = critic_forward(x, prepared)
    jax.block_until_ready(out)
    assert out.shape == (batch, 1), out.shape
    # Tolerance vs. identical bf16/f32 math (reduction order differs), loose vs. pure f32.
    assert jnp.allclose(out, critic_ref_bf16(x, prepared), atol=1e-3, rtol=1e-3)
    assert jnp.allclose(out, critic_ref_f32(x, params), atol=1e-2, rtol=1e-1)

    # Larger, non-multiple batch: exercises the 2-tile parallel grid + batch pad/slice.
    batch2 = 600
    x2 = jax.random.normal(kx2, (batch2, IN_DIM), jnp.float32)
    out2 = critic_forward(x2, prepared)
    jax.block_until_ready(out2)
    assert out2.shape == (batch2, 1), out2.shape
    assert jnp.allclose(out2, critic_ref_bf16(x2, prepared), atol=1e-3, rtol=1e-3)
    assert jnp.allclose(out2, critic_ref_f32(x2, params), atol=1e-2, rtol=1e-1)

    print("KERNEL_OK")
</pallas_src>

<mosaic_0001>
module attributes {stable_mosaic.version = 11 : i64} {
  func.func @critic_kernel(%arg0: i32, %arg1: memref<128x79xf32, #tpu.memory_space<vmem>>, %arg2: memref<79x256xbf16, #tpu.memory_space<vmem>>, %arg3: memref<1x256xf32, #tpu.memory_space<vmem>>, %arg4: memref<256x256xbf16, #tpu.memory_space<vmem>>, %arg5: memref<1x256xf32, #tpu.memory_space<vmem>>, %arg6: memref<1x256xbf16, #tpu.memory_space<vmem>>, %arg7: memref<1x1xf32, #tpu.memory_space<smem>>, %arg8: memref<1x128xf32, #tpu.memory_space<vmem>>) attributes {dimension_semantics = [#tpu.dimension_semantics<parallel>], iteration_bounds = array<i64: 1>, scalar_prefetch = 0 : i64, scratch_operands = 0 : i64, tpu.core_type = #tpu.core_type<tc>, window_params = [{transform_indices = @transform_0, window_bounds = array<i64: 128, 79>}, {pipeline_mode = #tpu.pipeline_mode<synchronous>, transform_indices = @transform_1, window_bounds = array<i64: 79, 256>}, {pipeline_mode = #tpu.pipeline_mode<synchronous>, transform_indices = @transform_2, window_bounds = array<i64: 1, 256>}, {pipeline_mode = #tpu.pipeline_mode<synchronous>, transform_indices = @transform_3, window_bounds = array<i64: 256, 256>}, {pipeline_mode = #tpu.pipeline_mode<synchronous>, transform_indices = @transform_4, window_bounds = array<i64: 1, 256>}, {pipeline_mode = #tpu.pipeline_mode<synchronous>, transform_indices = @transform_5, window_bounds = array<i64: 1, 256>}, {transform_indices = @transform_6, window_bounds = array<i64: 1, 1>}, {transform_indices = @transform_7, window_bounds = array<i64: 1, 128>}]} {
    %c0 = arith.constant 0 : index
    %c0_0 = arith.constant 0 : index
    %0 = vector.load %arg1[%c0, %c0_0] : memref<128x79xf32, #tpu.memory_space<vmem>>, vector<128x79xf32>
    %1 = arith.truncf %0 : vector<128x79xf32> to vector<128x79xbf16>
    %c0_1 = arith.constant 0 : index
    %c0_2 = arith.constant 0 : index
    %2 = vector.load %arg2[%c0_1, %c0_2] : memref<79x256xbf16, #tpu.memory_space<vmem>>, vector<79x256xbf16>
    %cst = arith.constant dense<0.000000e+00> : vector<128x256xf32>
    %3 = tpu.matmul %1, %2, %cst {dimension_numbers = #tpu.dot_dimension_numbers<[1], [0], [0], [1], [0, 0, 1, 1], [], []>} : vector<128x79xbf16>, vector<79x256xbf16>, vector<128x256xf32> -> vector<128x256xf32>
    %c0_3 = arith.constant 0 : index
    %c0_4 = arith.constant 0 : index
    %4 = vector.load %arg3[%c0_3, %c0_4] : memref<1x256xf32, #tpu.memory_space<vmem>>, vector<1x256xf32>
    %5 = vector.broadcast %4 : vector<1x256xf32> to vector<128x256xf32>
    %6 = arith.addf %3, %5 : vector<128x256xf32>
    %cst_5 = arith.constant 0.000000e+00 : f32
    %7 = vector.broadcast %cst_5 : f32 to vector<128x256xf32>
    %8 = arith.maximumf %6, %7 : vector<128x256xf32>
    %9 = arith.truncf %8 : vector<128x256xf32> to vector<128x256xbf16>
    %c0_6 = arith.constant 0 : index
    %c0_7 = arith.constant 0 : index
    %10 = vector.load %arg4[%c0_6, %c0_7] : memref<256x256xbf16, #tpu.memory_space<vmem>>, vector<256x256xbf16>
    %cst_8 = arith.constant dense<0.000000e+00> : vector<128x256xf32>
    %11 = tpu.matmul %9, %10, %cst_8 {dimension_numbers = #tpu.dot_dimension_numbers<[1], [0], [0], [1], [0, 0, 1, 1], [], []>} : vector<128x256xbf16>, vector<256x256xbf16>, vector<128x256xf32> -> vector<128x256xf32>
    %c0_9 = arith.constant 0 : index
    %c0_10 = arith.constant 0 : index
    %12 = vector.load %arg5[%c0_9, %c0_10] : memref<1x256xf32, #tpu.memory_space<vmem>>, vector<1x256xf32>
    %13 = vector.broadcast %12 : vector<1x256xf32> to vector<128x256xf32>
    %14 = arith.addf %11, %13 : vector<128x256xf32>
    %cst_11 = arith.constant 0.000000e+00 : f32
    %15 = vector.broadcast %cst_11 : f32 to vector<128x256xf32>
    %16 = arith.maximumf %14, %15 : vector<128x256xf32>
    %c0_12 = arith.constant 0 : index
    %c0_13 = arith.constant 0 : index
    %17 = vector.load %arg6[%c0_12, %c0_13] : memref<1x256xbf16, #tpu.memory_space<vmem>>, vector<1x256xbf16>
    %18 = arith.truncf %16 : vector<128x256xf32> to vector<128x256xbf16>
    %cst_14 = arith.constant dense<0.000000e+00> : vector<1x128xf32>
    %19 = tpu.matmul %17, %18, %cst_14 {dimension_numbers = #tpu.dot_dimension_numbers<[1], [1], [0], [0], [0, 0, 1, 0], [], []>} : vector<1x256xbf16>, vector<128x256xbf16>, vector<1x128xf32> -> vector<1x128xf32>
    %c0_15 = arith.constant 0 : index
    %c0_16 = arith.constant 0 : index
    %20 = memref.load %arg7[%c0_15, %c0_16] : memref<1x1xf32, #tpu.memory_space<smem>>
    %21 = vector.broadcast %20 : f32 to vector<1x128xf32>
    %22 = arith.addf %19, %21 : vector<1x128xf32>
    %c0_17 = arith.constant 0 : index
    %c0_18 = arith.constant 0 : index
    %23 = vector.load %arg8[%c0_17, %c0_18] : memref<1x128xf32, #tpu.memory_space<vmem>>, vector<1x128xf32>
    tpu.vector_store %arg8[%c0_17, %c0_18], %22 {strides = array<i32>} : memref<1x128xf32, #tpu.memory_space<vmem>>, vector<1x128xf32>,
    return
  }
  func.func @transform_0(%arg0: i32) -> (i32, i32) {
    %c0_i32 = arith.constant 0 : i32
    %c0_i32_0 = arith.constant 0 : i32
    return %arg0, %c0_i32 : i32, i32
  }
  func.func @transform_1(%arg0: i32) -> (i32, i32) {
    %c0_i32 = arith.constant 0 : i32
    %c0_i32_0 = arith.constant 0 : i32
    %c0_i32_1 = arith.constant 0 : i32
    return %c0_i32, %c0_i32_0 : i32, i32
  }
  func.func @transform_2(%arg0: i32) -> (i32, i32) {
    %c0_i32 = arith.constant 0 : i32
    %c0_i32_0 = arith.constant 0 : i32
    %c0_i32_1 = arith.constant 0 : i32
    return %c0_i32, %c0_i32_0 : i32, i32
  }
  func.func @transform_3(%arg0: i32) -> (i32, i32) {
    %c0_i32 = arith.constant 0 : i32
    %c0_i32_0 = arith.constant 0 : i32
    %c0_i32_1 = arith.constant 0 : i32
    return %c0_i32, %c0_i32_0 : i32, i32
  }
  func.func @transform_4(%arg0: i32) -> (i32, i32) {
    %c0_i32 = arith.constant 0 : i32
    %c0_i32_0 = arith.constant 0 : i32
    %c0_i32_1 = arith.constant 0 : i32
    return %c0_i32, %c0_i32_0 : i32, i32
  }
  func.func @transform_5(%arg0: i32) -> (i32, i32) {
    %c0_i32 = arith.constant 0 : i32
    %c0_i32_0 = arith.constant 0 : i32
    %c0_i32_1 = arith.constant 0 : i32
    return %c0_i32, %c0_i32_0 : i32, i32
  }
  func.func @transform_6(%arg0: i32) -> (i32, i32) {
    %c0_i32 = arith.constant 0 : i32
    %c0_i32_0 = arith.constant 0 : i32
    %c0_i32_1 = arith.constant 0 : i32
    return %c0_i32, %c0_i32_0 : i32, i32
  }
  func.func @transform_7(%arg0: i32) -> (i32, i32) {
    %c0_i32 = arith.constant 0 : i32
    %c0_i32_0 = arith.constant 0 : i32
    return %c0_i32, %arg0 : i32, i32
  }
}

</mosaic_0001>

<llo_original>
// kernel: tpu_custom_call.1
$region0: #{tpu_custom_call.1}
  #allocation0 [shape = 'u32[]', space=smem, size = 0x4, offset = 0x4, fixed_abs, tag = 'smem constant byte address 0x4 - core index']
  #allocation1 [shape = 'u32[72,128]{1,0:T(1,128)}', space=vmem, size = 0x9000, scoped, tag = 'internal scratch']
  #allocation2 [shape = 'f32[1,1]{1,0:T(1,128)S(6)}', space=smem, size = 0x200, scoped, tag = 'scoped memory for tpu_custom_call.1']
  %s0 = inlined_call_operand.vmem [shape: f32[128,79], index: 0, kind: input, shape index: {}]
  %s1 = inlined_call_operand.vmem [shape: bf16[79,256], index: 1, kind: input, shape index: {}]
  %s2 = inlined_call_operand.vmem [shape: f32[1,256], index: 2, kind: input, shape index: {}]
  %s3 = inlined_call_operand.hbm [shape: bf16[256,256], index: 3, kind: input, shape index: {}]
  %s4 = inlined_call_operand.vmem [shape: f32[1,256], index: 4, kind: input, shape index: {}]
  %s5 = inlined_call_operand.vmem [shape: bf16[1,256], index: 5, kind: input, shape index: {}]
  %s6 = inlined_call_operand.<no memory space> [shape: f32[1,1], index: 6, kind: input, shape index: {}]
  %s7 = inlined_call_operand.hbm [shape: f32[1,128], index: 7, kind: output, shape index: {}]
  %s8 = sld [smem:[#allocation0]]
  $region42: #{tpu_custom_call.1} parent=0
    _
  %s10 = ssub.s32 1, %s8
  %s11 = scalar_select 0, %s10, %s8
  %12 = sst [smem:[#allocation2]] %s6
  $region1: #{tpu_custom_call.1} parent=0
    #allocation3 [shape = 'u8[131072]{0}', space=vmem, size = 0x20000, scoped, tag = 'input window, operand 3, single buffered']
    #allocation4 [shape = 's32[1]{0}', space=sflag, size = 0x4, scoped, tag = 'scoped memory for tpu_custom_call.1']
    #allocation5 [shape = 's32[1]{0}', space=sflag, size = 0x4, scoped, tag = 'scoped memory for tpu_custom_call.1']
    #allocation6 [shape = 'u8[512]{0}', space=vmem, size = 0x400, scoped, tag = 'output window, operand 0, single buffered']
    %13 = vsyncpa [#allocation4], 0
    %14 = vsyncpa [#allocation5], 0
    // Predicated region
    $region2: #{tpu_custom_call.1} parent=1 // pred_check
      _
    $region3: #{tpu_custom_call.1} parent=1 // pred_check_branch
      %16 = sbr.rel (0) target = $region5
    $region4: #{tpu_custom_call.1} parent=1 // pred_region
      _
    $region5: #{tpu_custom_call.1} parent=1 // pred_fallthru
      _
    // Predicated region
    $region6: #{tpu_custom_call.1} parent=1 // pred_check
      _
    $region7: #{tpu_custom_call.1} parent=1 // pred_check_branch
      %18 = sbr.rel (0) target = $region9
    $region8: #{tpu_custom_call.1} parent=1 // pred_region
      _
    $region9: #{tpu_custom_call.1} parent=1 // pred_fallthru
      _
    // Predicated region
    $region10: #{tpu_custom_call.1} parent=1 // pred_check
      _
    $region11: #{tpu_custom_call.1} parent=1 // pred_check_branch
      %20 = sbr.rel (0) target = $region13
    $region12: #{tpu_custom_call.1} parent=1 // pred_region
      _
    $region13: #{tpu_custom_call.1} parent=1 // pred_fallthru
      _
    // Predicated region
    $region14: #{tpu_custom_call.1} parent=1 // pred_check
      _
    $region15: #{tpu_custom_call.1} parent=1 // pred_check_branch
      %22 = sbr.rel (0) target = $region17
    $region16: #{tpu_custom_call.1} parent=1 // pred_region
      %24 = vsyncadd [#allocation4], 0
      %s25 = sshll.u32 %s3, 4
      %s26 = int_to_ptr.hbm [resolvable:$true] %s25
      %s27 = sshll.u32 [#allocation3], 4
      %s28 = int_to_ptr.vmem [resolvable:$true] %s27
      %33 = dma.hbm_to_vmem [thread:$0]  %s26, 4096, %s28, [#allocation4], 128, 128, 8
    $region17: #{tpu_custom_call.1} parent=1 // pred_fallthru
      _
    // Predicated region
    $region18: #{tpu_custom_call.1} parent=1 // pred_check
      _
    $region19: #{tpu_custom_call.1} parent=1 // pred_check_branch
      %35 = sbr.rel (0) target = $region21
    $region20: #{tpu_custom_call.1} parent=1 // pred_region
      _
    $region21: #{tpu_custom_call.1} parent=1 // pred_fallthru
      _
    // Predicated region
    $region22: #{tpu_custom_call.1} parent=1 // pred_check
      _
    $region23: #{tpu_custom_call.1} parent=1 // pred_check_branch
      %37 = sbr.rel (0) target = $region25
    $region24: #{tpu_custom_call.1} parent=1 // pred_region
      _
    $region25: #{tpu_custom_call.1} parent=1 // pred_fallthru
      _
    // Predicated region
    $region26: #{tpu_custom_call.1} parent=1 // pred_check
      _
    $region27: #{tpu_custom_call.1} parent=1 // pred_check_branch
      %39 = sbr.rel (0) target = $region29
    $region28: #{tpu_custom_call.1} parent=1 // pred_region
      _
    $region29: #{tpu_custom_call.1} parent=1 // pred_fallthru
      _
    // Predicated region
    $region30: #{tpu_custom_call.1} parent=1 // pred_check
      _
    $region31: #{tpu_custom_call.1} parent=1 // pred_check_branch
      %41 = sbr.rel (0) target = $region33
    $region32: #{tpu_custom_call.1} parent=1 // pred_region
      %43 = dma.done [#allocation4], 4096
    $region33: #{tpu_custom_call.1} parent=1 // pred_fallthru
      _
    %v45 = vld [vmem:[%s0] sm:$0xff]
    %v46 = vld [vmem:[%s0 + $0x8] sm:$0xff]
    %v47 = vld [vmem:[%s0 + $0x10] sm:$0xff]
    %v48 = vld [vmem:[%s0 + $0x18] sm:$0xff]
    %v49 = vld [vmem:[%s0 + $0x20] sm:$0xff]
    %v50 = vld [vmem:[%s0 + $0x28] sm:$0xff]
    %v51 = vld [vmem:[%s0 + $0x30] sm:$0xff]
    %v52 = vld [vmem:[%s0 + $0x38] sm:$0xff]
    %v53 = vld [vmem:[%s0 + $0x40] sm:$0xff]
    %v54 = vld [vmem:[%s0 + $0x48] sm:$0xff]
    %v55 = vld [vmem:[%s0 + $0x50] sm:$0xff]
    %v56 = vld [vmem:[%s0 + $0x58] sm:$0xff]
    %v57 = vld [vmem:[%s0 + $0x60] sm:$0xff]
    %v58 = vld [vmem:[%s0 + $0x68] sm:$0xff]
    %v59 = vld [vmem:[%s0 + $0x70] sm:$0xff]
    %v60 = vld [vmem:[%s0 + $0x78] sm:$0xff]
    %v61 = vpack.c.bf16 %v46, %v45
    %v62 = vpack.c.bf16 %v48, %v47
    %v63 = vpack.c.bf16 %v50, %v49
    %v64 = vpack.c.bf16 %v52, %v51
    %v65 = vpack.c.bf16 %v54, %v53
    %v66 = vpack.c.bf16 %v56, %v55
    %v67 = vpack.c.bf16 %v58, %v57
    %v68 = vpack.c.bf16 %v60, %v59
    %v69 = vld [vmem:[%s1] sm:$0xff]
    %v70 = vld [vmem:[%s1 + $0x8] sm:$0xff]
    %v71 = vld [vmem:[%s1 + $0x10] sm:$0xff]
    %v72 = vld [vmem:[%s1 + $0x18] sm:$0xff]
    %v73 = vld [vmem:[%s1 + $0x20] sm:$0xff]
    %v74 = vld [vmem:[%s1 + $0x28] sm:$0xff]
    %v75 = vld [vmem:[%s1 + $0x30] sm:$0xff]
    %v76 = vld [vmem:[%s1 + $0x38] sm:$0xff]
    %v77 = vld [vmem:[%s1 + $0x40] sm:$0xff]
    %v78 = vld [vmem:[%s1 + $0x48] sm:$0xff]
    %v79 = vld [vmem:[%s2] sm:$0x3]
    %v81 = vperm.slane %v79, 0
    %v82 = vperm.slane %v79, 1
    %v95 = vunpack.c.l.b16 %v69
    %v96 = vunpack.c.h.b16 %v69
    %v97 = vunpack.c.l.b16 %v70
    %v98 = vunpack.c.h.b16 %v70
    %v99 = vunpack.c.l.b16 %v71
    %v100 = vunpack.c.h.b16 %v71
    %v101 = vunpack.c.l.b16 %v72
    %v102 = vunpack.c.h.b16 %v72
    %v103 = vunpack.c.l.b16 %v73
    %v104 = vunpack.c.h.b16 %v73
    %v105 = vunpack.c.l.b16 %v74
    %v106 = vunpack.c.h.b16 %v74
    %v107 = vunpack.c.l.b16 %v75
    %v108 = vunpack.c.h.b16 %v75
    %v109 = vunpack.c.l.b16 %v76
    %v110 = vunpack.c.h.b16 %v76
    %v111 = vunpack.c.l.b16 %v77
    %v112 = vunpack.c.h.b16 %v77
    %v113 = vunpack.c.l.b16 %v78
    %v114 = vunpack.c.h.b16 %v78
    %v115 = vpack.c.b16 %v97, %v95
    %v116 = vpack.c.b16 %v98, %v96
    %v117 = vpack.c.b16 %v101, %v99
    %v118 = vpack.c.b16 %v102, %v100
    %v119 = vpack.c.b16 %v105, %v103
    %v120 = vpack.c.b16 %v106, %v104
    %v121 = vpack.c.b16 %v109, %v107
    %v122 = vpack.c.b16 %v110, %v108
    %v123 = vpack.c.b16 %v113, %v111
    %v124 = vpack.c.b16 %v114, %v112
    %vm133 = vcmask 646144
    %v135 = vsel %vm133, %v61, 0
    %v138 = vsel %vm133, %v62, 0
    %v141 = vsel %vm133, %v63, 0
    %v144 = vsel %vm133, %v64, 0
    %v147 = vsel %vm133, %v65, 0
    %v150 = vsel %vm133, %v66, 0
    %v153 = vsel %vm133, %v67, 0
    %v156 = vsel %vm133, %v68, 0
    %vm158 = vcmask 1046528
    %vm159 = vcmask 1047552
    %v160 = vsel %vm158, 4294967295, 65535
    %v161 = vsel %vm159, %v160, 0
    %v163 = vand.u32 %v123, %v161
    %v166 = vand.u32 %v124, %v161
    %168 = vmatpush.bf16.msra.mxu0 0
    %169 = vmatpush.bf16.msra.mxu0 0
    %170 = vmatpush.bf16.msra.mxu0 0
    %171 = vmatpush.bf16.msra.mxu0 %v163
    %172 = vmatpush.bf16.msra.mxu0 %v121
    %173 = vmatpush.bf16.msra.mxu0 %v119
    %174 = vmatpush.bf16.msra.mxu0 %v117
    %175 = vmatpush.bf16.msra.mxu0 %v115
    %176 = vmatmul.bf16.gmra.mxu0 %v135
    %v177 = vpop.f32.mrf.mxu0
    %v178 = vadd.f32 %v81, %v177
    %v179 = vpop.f32.mrf.mxu0
    %v180 = vadd.f32 %v81, %v179
    %181 = vmatmul.bf16.gmra.mxu0 %v138
    %v182 = vpop.f32.mrf.mxu0
    %v183 = vadd.f32 %v81, %v182
    %v184 = vpop.f32.mrf.mxu0
    %v185 = vadd.f32 %v81, %v184
    %186 = vmatmul.bf16.gmra.mxu0 %v141
    %v187 = vpop.f32.mrf.mxu0
    %v188 = vadd.f32 %v81, %v187
    %v189 = vpop.f32.mrf.mxu0
    %v190 = vadd.f32 %v81, %v189
    %191 = vmatmul.bf16.gmra.mxu0 %v144
    %v192 = vpop.f32.mrf.mxu0
    %v193 = vadd.f32 %v81, %v192
    %v194 = vpop.f32.mrf.mxu0
    %v195 = vadd.f32 %v81, %v194
    %196 = vmatmul.bf16.gmra.mxu0 %v147
    %v197 = vpop.f32.mrf.mxu0
    %v198 = vadd.f32 %v81, %v197
    %v199 = vpop.f32.mrf.mxu0
    %v200 = vadd.f32 %v81, %v199
    %201 = vmatmul.bf16.gmra.mxu0 %v150
    %v202 = vpop.f32.mrf.mxu0
    %v203 = vadd.f32 %v81, %v202
    %v204 = vpop.f32.mrf.mxu0
    %v205 = vadd.f32 %v81, %v204
    %206 = vmatmul.bf16.gmra.mxu0 %v153
    %v207 = vpop.f32.mrf.mxu0
    %v208 = vadd.f32 %v81, %v207
    %v209 = vpop.f32.mrf.mxu0
    %v210 = vadd.f32 %v81, %v209
    %211 = vmatmul.bf16.gmra.mxu0 %v156
    %v212 = vpop.f32.mrf.mxu0
    %v213 = vadd.f32 %v81, %v212
    %v214 = vpop.f32.mrf.mxu0
    %v215 = vadd.f32 %v81, %v214
    %216 = vdwg.mxu0
    %217 = vmatpush.bf16.msra.mxu0 0
    %218 = vmatpush.bf16.msra.mxu0 0
    %219 = vmatpush.bf16.msra.mxu0 0
    %220 = vmatpush.bf16.msra.mxu0 %v166
    %221 = vmatpush.bf16.msra.mxu0 %v122
    %222 = vmatpush.bf16.msra.mxu0 %v120
    %223 = vmatpush.bf16.msra.mxu0 %v118
    %224 = vmatpush.bf16.msra.mxu0 %v116
    %225 = vmatmul.bf16.gmra.mxu0 %v135
    %v226 = vpop.f32.mrf.mxu0
    %v227 = vadd.f32 %v82, %v226
    %v228 = vpop.f32.mrf.mxu0
    %v229 = vadd.f32 %v82, %v228
    %230 = vmatmul.bf16.gmra.mxu0 %v138
    %v231 = vpop.f32.mrf.mxu0
    %v232 = vadd.f32 %v82, %v231
    %v233 = vpop.f32.mrf.mxu0
    %v234 = vadd.f32 %v82, %v233
    %235 = vmatmul.bf16.gmra.mxu0 %v141
    %v236 = vpop.f32.mrf.mxu0
    %v237 = vadd.f32 %v82, %v236
    %v238 = vpop.f32.mrf.mxu0
    %v239 = vadd.f32 %v82, %v238
    %240 = vmatmul.bf16.gmra.mxu0 %v144
    %v241 = vpop.f32.mrf.mxu0
    %v242 = vadd.f32 %v82, %v241
    %v243 = vpop.f32.mrf.mxu0
    %v244 = vadd.f32 %v82, %v243
    %245 = vmatmul.bf16.gmra.mxu0 %v147
    %v246 = vpop.f32.mrf.mxu0
    %v247 = vadd.f32 %v82, %v246
    %v248 = vpop.f32.mrf.mxu0
    %v249 = vadd.f32 %v82, %v248
    %250 = vmatmul.bf16.gmra.mxu0 %v150
    %v251 = vpop.f32.mrf.mxu0
    %v252 = vadd.f32 %v82, %v251
    %v253 = vpop.f32.mrf.mxu0
    %v254 = vadd.f32 %v82, %v253
    %255 = vmatmul.bf16.gmra.mxu0 %v153
    %v256 = vpop.f32.mrf.mxu0
    %v257 = vadd.f32 %v82, %v256
    %v258 = vpop.f32.mrf.mxu0
    %v259 = vadd.f32 %v82, %v258
    %260 = vmatmul.bf16.gmra.mxu0 %v156
    %v261 = vpop.f32.mrf.mxu0
    %v262 = vadd.f32 %v82, %v261
    %v263 = vpop.f32.mrf.mxu0
    %v264 = vadd.f32 %v82, %v263
    %265 = vdwg.mxu0
    %v266 = vmax.f32 %v178, 0.0
    %v267 = vmax.f32 %v227, 0.0
    %v268 = vmax.f32 %v180, 0.0
    %v269 = vmax.f32 %v229, 0.0
    %v270 = vmax.f32 %v183, 0.0
    %v271 = vmax.f32 %v232, 0.0
    %v272 = vmax.f32 %v185, 0.0
    %v273 = vmax.f32 %v234, 0.0
    %v274 = vmax.f32 %v188, 0.0
    %v275 = vmax.f32 %v237, 0.0
    %v276 = vmax.f32 %v190, 0.0
    %v277 = vmax.f32 %v239, 0.0
    %v278 = vmax.f32 %v193, 0.0
    %v279 = vmax.f32 %v242, 0.0
    %v280 = vmax.f32 %v195, 0.0
    %v281 = vmax.f32 %v244, 0.0
    %v282 = vmax.f32 %v198, 0.0
    %v283 = vmax.f32 %v247, 0.0
    %v284 = vmax.f32 %v200, 0.0
    %v285 = vmax.f32 %v249, 0.0
    %v286 = vmax.f32 %v203, 0.0
    %v287 = vmax.f32 %v252, 0.0
    %v288 = vmax.f32 %v205, 0.0
    %v289 = vmax.f32 %v254, 0.0
    %v290 = vmax.f32 %v208, 0.0
    %v291 = vmax.f32 %v257, 0.0
    %v292 = vmax.f32 %v210, 0.0
    %v293 = vmax.f32 %v259, 0.0
    %v294 = vmax.f32 %v213, 0.0
    %v295 = vmax.f32 %v262, 0.0
    %v296 = vmax.f32 %v215, 0.0
    %v297 = vmax.f32 %v264, 0.0
    %v298 = vpack.c.bf16 %v268, %v266
    %v299 = vpack.c.bf16 %v269, %v267
    %v300 = vpack.c.bf16 %v272, %v270
    %v301 = vpack.c.bf16 %v273, %v271
    %v302 = vpack.c.bf16 %v276, %v274
    %v303 = vpack.c.bf16 %v277, %v275
    %v304 = vpack.c.bf16 %v280, %v278
    %v305 = vpack.c.bf16 %v281, %v279
    %v306 = vpack.c.bf16 %v284, %v282
    %v307 = vpack.c.bf16 %v285, %v283
    %v308 = vpack.c.bf16 %v288, %v286
    %v309 = vpack.c.bf16 %v289, %v287
    %v310 = vpack.c.bf16 %v292, %v290
    %v311 = vpack.c.bf16 %v293, %v291
    %v312 = vpack.c.bf16 %v296, %v294
    %v313 = vpack.c.bf16 %v297, %v295
    %v314 = vld [vmem:[#allocation3] sm:$0xff]
    %v315 = vld [vmem:[#allocation3 + $0x8] sm:$0xff]
    %v316 = vld [vmem:[#allocation3 + $0x10] sm:$0xff]
    %v317 = vld [vmem:[#allocation3 + $0x18] sm:$0xff]
    %v318 = vld [vmem:[#allocation3 + $0x20] sm:$0xff]
    %v319 = vld [vmem:[#allocation3 + $0x28] sm:$0xff]
    %v320 = vld [vmem:[#allocation3 + $0x30] sm:$0xff]
    %v321 = vld [vmem:[#allocation3 + $0x38] sm:$0xff]
    %v322 = vld [vmem:[#allocation3 + $0x40] sm:$0xff]
    %v323 = vld [vmem:[#allocation3 + $0x48] sm:$0xff]
    %v324 = vld [vmem:[#allocation3 + $0x50] sm:$0xff]
    %v325 = vld [vmem:[#allocation3 + $0x58] sm:$0xff]
    %v326 = vld [vmem:[#allocation3 + $0x60] sm:$0xff]
    %v327 = vld [vmem:[#allocation3 + $0x68] sm:$0xff]
    %v328 = vld [vmem:[#allocation3 + $0x70] sm:$0xff]
    %v329 = vld [vmem:[#allocation3 + $0x78] sm:$0xff]
    %v330 = vld [vmem:[#allocation3 + $0x80] sm:$0xff]
    %v331 = vld [vmem:[#allocation3 + $0x88] sm:$0xff]
    %v332 = vld [vmem:[#allocation3 + $0x90] sm:$0xff]
    %v333 = vld [vmem:[#allocation3 + $0x98] sm:$0xff]
    %v334 = vld [vmem:[#allocation3 + $0xa0] sm:$0xff]
    %v335 = vld [vmem:[#allocation3 + $0xa8] sm:$0xff]
    %v336 = vld [vmem:[#allocation3 + $0xb0] sm:$0xff]
    %v337 = vld [vmem:[#allocation3 + $0xb8] sm:$0xff]
    %v338 = vld [vmem:[#allocation3 + $0xc0] sm:$0xff]
    %v339 = vld [vmem:[#allocation3 + $0xc8] sm:$0xff]
    %v340 = vld [vmem:[#allocation3 + $0xd0] sm:$0xff]
    %v341 = vld [vmem:[#allocation3 + $0xd8] sm:$0xff]
    %v342 = vld [vmem:[#allocation3 + $0xe0] sm:$0xff]
    %v343 = vld [vmem:[#allocation3 + $0xe8] sm:$0xff]
    %v344 = vld [vmem:[#allocation3 + $0xf0] sm:$0xff]
    %v345 = vld [vmem:[#allocation3 + $0xf8] sm:$0xff]
    %v346 = vld [vmem:[%s4] sm:$0x3]
    %v348 = vperm.slane %v346, 0
    %v349 = vperm.slane %v346, 1
    %v384 = vunpack.c.l.b16 %v314
    %v385 = vunpack.c.h.b16 %v314
    %v386 = vunpack.c.l.b16 %v315
    %v387 = vunpack.c.h.b16 %v315
    %v388 = vunpack.c.l.b16 %v316
    %v389 = vunpack.c.h.b16 %v316
    %v390 = vunpack.c.l.b16 %v317
    %v391 = vunpack.c.h.b16 %v317
    %v392 = vunpack.c.l.b16 %v318
    %v393 = vunpack.c.h.b16 %v318
    %v394 = vunpack.c.l.b16 %v319
    %v395 = vunpack.c.h.b16 %v319
    %v396 = vunpack.c.l.b16 %v320
    %v397 = vunpack.c.h.b16 %v320
    %v398 = vunpack.c.l.b16 %v321
    %v399 = vunpack.c.h.b16 %v321
    %v400 = vunpack.c.l.b16 %v322
    %v401 = vunpack.c.h.b16 %v322
    %v402 = vunpack.c.l.b16 %v323
    %v403 = vunpack.c.h.b16 %v323
    %v404 = vunpack.c.l.b16 %v324
    %v405 = vunpack.c.h.b16 %v324
    %v406 = vunpack.c.l.b16 %v325
    %v407 = vunpack.c.h.b16 %v325
    %v408 = vunpack.c.l.b16 %v326
    %v409 = vunpack.c.h.b16 %v326
    %v410 = vunpack.c.l.b16 %v327
    %v411 = vunpack.c.h.b16 %v327
    %v412 = vunpack.c.l.b16 %v328
    %v413 = vunpack.c.h.b16 %v328
    %v414 = vunpack.c.l.b16 %v329
    %v415 = vunpack.c.h.b16 %v329
    %v416 = vunpack.c.l.b16 %v330
    %v417 = vunpack.c.h.b16 %v330
    %v418 = vunpack.c.l.b16 %v331
    %v419 = vunpack.c.h.b16 %v331
    %v420 = vunpack.c.l.b16 %v332
    %v421 = vunpack.c.h.b16 %v332
    %v422 = vunpack.c.l.b16 %v333
    %v423 = vunpack.c.h.b16 %v333
    %v424 = vunpack.c.l.b16 %v334
    %v425 = vunpack.c.h.b16 %v334
    %v426 = vunpack.c.l.b16 %v335
    %v427 = vunpack.c.h.b16 %v335
    %v428 = vunpack.c.l.b16 %v336
    %v429 = vunpack.c.h.b16 %v336
    %v430 = vunpack.c.l.b16 %v337
    %v431 = vunpack.c.h.b16 %v337
    %v432 = vunpack.c.l.b16 %v338
    %v433 = vunpack.c.h.b16 %v338
    %v434 = vunpack.c.l.b16 %v339
    %v435 = vunpack.c.h.b16 %v339
    %v436 = vunpack.c.l.b16 %v340
    %v437 = vunpack.c.h.b16 %v340
    %v438 = vunpack.c.l.b16 %v341
    %v439 = vunpack.c.h.b16 %v341
    %v440 = vunpack.c.l.b16 %v342
    %v441 = vunpack.c.h.b16 %v342
    %v442 = vunpack.c.l.b16 %v343
    %v443 = vunpack.c.h.b16 %v343
    %v444 = vunpack.c.l.b16 %v344
    %v445 = vunpack.c.h.b16 %v344
    %v446 = vunpack.c.l.b16 %v345
    %v447 = vunpack.c.h.b16 %v345
    %v448 = vpack.c.b16 %v386, %v384
    %v449 = vpack.c.b16 %v387, %v385
    %v450 = vpack.c.b16 %v390, %v388
    %v451 = vpack.c.b16 %v391, %v389
    %v452 = vpack.c.b16 %v394, %v392
    %v453 = vpack.c.b16 %v395, %v393
    %v454 = vpack.c.b16 %v398, %v396
    %v455 = vpack.c.b16 %v399, %v397
    %v456 = vpack.c.b16 %v402, %v400
    %v457 = vpack.c.b16 %v403, %v401
    %v458 = vpack.c.b16 %v406, %v404
    %v459 = vpack.c.b16 %v407, %v405
    %v460 = vpack.c.b16 %v410, %v408
    %v461 = vpack.c.b16 %v411, %v409
    %v462 = vpack.c.b16 %v414, %v412
    %v463 = vpack.c.b16 %v415, %v413
    %v464 = vpack.c.b16 %v418, %v416
    %v465 = vpack.c.b16 %v419, %v417
    %v466 = vpack.c.b16 %v422, %v420
    %v467 = vpack.c.b16 %v423, %v421
    %v468 = vpack.c.b16 %v426, %v424
    %v469 = vpack.c.b16 %v427, %v425
    %v470 = vpack.c.b16 %v430, %v428
    %v471 = vpack.c.b16 %v431, %v429
    %v472 = vpack.c.b16 %v434, %v432
    %v473 = vpack.c.b16 %v435, %v433
    %v474 = vpack.c.b16 %v438, %v436
    %v475 = vpack.c.b16 %v439, %v437
    %v476 = vpack.c.b16 %v442, %v440
    %v477 = vpack.c.b16 %v443, %v441
    %v478 = vpack.c.b16 %v446, %v444
    %v479 = vpack.c.b16 %v447, %v445
    %512 = vmatpush.bf16.msra.mxu0 %v462
    %513 = vmatpush.bf16.msra.mxu0 %v460
    %514 = vmatpush.bf16.msra.mxu0 %v458
    %515 = vmatpush.bf16.msra.mxu0 %v456
    %516 = vmatpush.bf16.msra.mxu0 %v454
    %517 = vmatpush.bf16.msra.mxu0 %v452
    %518 = vmatpush.bf16.msra.mxu0 %v450
    %519 = vmatpush.bf16.msra.mxu0 %v448
    %520 = vmatmul.bf16.gmra.mxu0 %v298
    %v521 = vpop.f32.mrf.mxu0
    %v522 = vadd.f32 %v348, %v521
    %v523 = vpop.f32.mrf.mxu0
    %v524 = vadd.f32 %v348, %v523
    %525 = vmatmul.bf16.gmra.mxu0 %v300
    %v526 = vpop.f32.mrf.mxu0
    %v527 = vadd.f32 %v348, %v526
    %v528 = vpop.f32.mrf.mxu0
    %v529 = vadd.f32 %v348, %v528
    %530 = vmatmul.bf16.gmra.mxu0 %v302
    %v531 = vpop.f32.mrf.mxu0
    %v532 = vadd.f32 %v348, %v531
    %v533 = vpop.f32.mrf.mxu0
    %v534 = vadd.f32 %v348, %v533
    %535 = vmatmul.bf16.gmra.mxu0 %v304
    %v536 = vpop.f32.mrf.mxu0
    %v537 = vadd.f32 %v348, %v536
    %v538 = vpop.f32.mrf.mxu0
    %v539 = vadd.f32 %v348, %v538
    %540 = vmatmul.bf16.gmra.mxu0 %v306
    %v541 = vpop.f32.mrf.mxu0
    %v542 = vadd.f32 %v348, %v541
    %v543 = vpop.f32.mrf.mxu0
    %v544 = vadd.f32 %v348, %v543
    %545 = vmatmul.bf16.gmra.mxu0 %v308
    %v546 = vpop.f32.mrf.mxu0
    %v547 = vadd.f32 %v348, %v546
    %v548 = vpop.f32.mrf.mxu0
    %v549 = vadd.f32 %v348, %v548
    %550 = vmatmul.bf16.gmra.mxu0 %v310
    %v551 = vpop.f32.mrf.mxu0
    %v552 = vadd.f32 %v348, %v551
    %v553 = vpop.f32.mrf.mxu0
    %v554 = vadd.f32 %v348, %v553
    %555 = vmatmul.bf16.gmra.mxu0 %v312
    %v556 = vpop.f32.mrf.mxu0
    %v557 = vadd.f32 %v348, %v556
    %v558 = vpop.f32.mrf.mxu0
    %v559 = vadd.f32 %v348, %v558
    %560 = vdwg.mxu0
    %561 = vmatpush.bf16.msra.mxu0 %v478
    %562 = vmatpush.bf16.msra.mxu0 %v476
    %563 = vmatpush.bf16.msra.mxu0 %v474
    %564 = vmatpush.bf16.msra.mxu0 %v472
    %565 = vmatpush.bf16.msra.mxu0 %v470
    %566 = vmatpush.bf16.msra.mxu0 %v468
    %567 = vmatpush.bf16.msra.mxu0 %v466
    %568 = vmatpush.bf16.msra.mxu0 %v464
    %569 = vmatmul.bf16.gmra.mxu0 %v299
    %v570 = vpop.f32.mrf.mxu0
    %v571 = vadd.f32 %v522, %v570
    %v572 = vpop.f32.mrf.mxu0
    %v573 = vadd.f32 %v524, %v572
    %574 = vmatmul.bf16.gmra.mxu0 %v301
    %v575 = vpop.f32.mrf.mxu0
    %v576 = vadd.f32 %v527, %v575
    %v577 = vpop.f32.mrf.mxu0
    %v578 = vadd.f32 %v529, %v577
    %579 = vmatmul.bf16.gmra.mxu0 %v303
    %v580 = vpop.f32.mrf.mxu0
    %v581 = vadd.f32 %v532, %v580
    %v582 = vpop.f32.mrf.mxu0
    %v583 = vadd.f32 %v534, %v582
    %584 = vmatmul.bf16.gmra.mxu0 %v305
    %v585 = vpop.f32.mrf.mxu0
    %v586 = vadd.f32 %v537, %v585
    %v587 = vpop.f32.mrf.mxu0
    %v588 = vadd.f32 %v539, %v587
    %589 = vmatmul.bf16.gmra.mxu0 %v307
    %v590 = vpop.f32.mrf.mxu0
    %v591 = vadd.f32 %v542, %v590
    %v592 = vpop.f32.mrf.mxu0
    %v593 = vadd.f32 %v544, %v592
    %594 = vmatmul.bf16.gmra.mxu0 %v309
    %v595 = vpop.f32.mrf.mxu0
    %v596 = vadd.f32 %v547, %v595
    %v597 = vpop.f32.mrf.mxu0
    %v598 = vadd.f32 %v549, %v597
    %599 = vmatmul.bf16.gmra.mxu0 %v311
    %v600 = vpop.f32.mrf.mxu0
    %v601 = vadd.f32 %v552, %v600
    %v602 = vpop.f32.mrf.mxu0
    %v603 = vadd.f32 %v554, %v602
    %604 = vmatmul.bf16.gmra.mxu0 %v313
    %v605 = vpop.f32.mrf.mxu0
    %v606 = vadd.f32 %v557, %v605
    %v607 = vpop.f32.mrf.mxu0
    %v608 = vadd.f32 %v559, %v607
    %609 = vdwg.mxu0
    %610 = vmatpush.bf16.msra.mxu0 %v463
    %611 = vmatpush.bf16.msra.mxu0 %v461
    %612 = vmatpush.bf16.msra.mxu0 %v459
    %613 = vmatpush.bf16.msra.mxu0 %v457
    %614 = vmatpush.bf16.msra.mxu0 %v455
    %615 = vmatpush.bf16.msra.mxu0 %v453
    %616 = vmatpush.bf16.msra.mxu0 %v451
    %617 = vmatpush.bf16.msra.mxu0 %v449
    %618 = vmatmul.bf16.gmra.mxu0 %v298
    %v619 = vpop.f32.mrf.mxu0
    %v620 = vadd.f32 %v349, %v619
    %v621 = vpop.f32.mrf.mxu0
    %v622 = vadd.f32 %v349, %v621
    %623 = vmatmul.bf16.gmra.mxu0 %v300
    %v624 = vpop.f32.mrf.mxu0
    %v625 = vadd.f32 %v349, %v624
    %v626 = vpop.f32.mrf.mxu0
    %v627 = vadd.f32 %v349, %v626
    %628 = vmatmul.bf16.gmra.mxu0 %v302
    %v629 = vpop.f32.mrf.mxu0
    %v630 = vadd.f32 %v349, %v629
    %v631 = vpop.f32.mrf.mxu0
    %v632 = vadd.f32 %v349, %v631
    %633 = vmatmul.bf16.gmra.mxu0 %v304
    %v634 = vpop.f32.mrf.mxu0
    %v635 = vadd.f32 %v349, %v634
    %v636 = vpop.f32.mrf.mxu0
    %v637 = vadd.f32 %v349, %v636
    %638 = vmatmul.bf16.gmra.mxu0 %v306
    %v639 = vpop.f32.mrf.mxu0
    %v640 = vadd.f32 %v349, %v639
    %v641 = vpop.f32.mrf.mxu0
    %v642 = vadd.f32 %v349, %v641
    %643 = vmatmul.bf16.gmra.mxu0 %v308
    %v644 = vpop.f32.mrf.mxu0
    %v645 = vadd.f32 %v349, %v644
    %v646 = vpop.f32.mrf.mxu0
    %v647 = vadd.f32 %v349, %v646
    %648 = vmatmul.bf16.gmra.mxu0 %v310
    %v649 = vpop.f32.mrf.mxu0
    %v650 = vadd.f32 %v349, %v649
    %v651 = vpop.f32.mrf.mxu0
    %v652 = vadd.f32 %v349, %v651
    %653 = vmatmul.bf16.gmra.mxu0 %v312
    %v654 = vpop.f32.mrf.mxu0
    %v655 = vadd.f32 %v349, %v654
    %v656 = vpop.f32.mrf.mxu0
    %v657 = vadd.f32 %v349, %v656
    %658 = vdwg.mxu0
    %659 = vmatpush.bf16.msra.mxu0 %v479
    %660 = vmatpush.bf16.msra.mxu0 %v477
    %661 = vmatpush.bf16.msra.mxu0 %v475
    %662 = vmatpush.bf16.msra.mxu0 %v473
    %663 = vmatpush.bf16.msra.mxu0 %v471
    %664 = vmatpush.bf16.msra.mxu0 %v469
    %665 = vmatpush.bf16.msra.mxu0 %v467
    %666 = vmatpush.bf16.msra.mxu0 %v465
    %667 = vmatmul.bf16.gmra.mxu0 %v299
    %v668 = vpop.f32.mrf.mxu0
    %v669 = vadd.f32 %v620, %v668
    %v670 = vpop.f32.mrf.mxu0
    %v671 = vadd.f32 %v622, %v670
    %672 = vmatmul.bf16.gmra.mxu0 %v301
    %v673 = vpop.f32.mrf.mxu0
    %v674 = vadd.f32 %v625, %v673
    %v675 = vpop.f32.mrf.mxu0
    %v676 = vadd.f32 %v627, %v675
    %677 = vmatmul.bf16.gmra.mxu0 %v303
    %v678 = vpop.f32.mrf.mxu0
    %v679 = vadd.f32 %v630, %v678
    %v680 = vpop.f32.mrf.mxu0
    %v681 = vadd.f32 %v632, %v680
    %682 = vmatmul.bf16.gmra.mxu0 %v305
    %v683 = vpop.f32.mrf.mxu0
    %v684 = vadd.f32 %v635, %v683
    %v685 = vpop.f32.mrf.mxu0
    %v686 = vadd.f32 %v637, %v685
    %687 = vmatmul.bf16.gmra.mxu0 %v307
    %v688 = vpop.f32.mrf.mxu0
    %v689 = vadd.f32 %v640, %v688
    %v690 = vpop.f32.mrf.mxu0
    %v691 = vadd.f32 %v642, %v690
    %692 = vmatmul.bf16.gmra.mxu0 %v309
    %v693 = vpop.f32.mrf.mxu0
    %v694 = vadd.f32 %v645, %v693
    %v695 = vpop.f32.mrf.mxu0
    %v696 = vadd.f32 %v647, %v695
    %697 = vmatmul.bf16.gmra.mxu0 %v311
    %v698 = vpop.f32.mrf.mxu0
    %v699 = vadd.f32 %v650, %v698
    %v700 = vpop.f32.mrf.mxu0
    %v701 = vadd.f32 %v652, %v700
    %702 = vmatmul.bf16.gmra.mxu0 %v313
    %v703 = vpop.f32.mrf.mxu0
    %v704 = vadd.f32 %v655, %v703
    %v705 = vpop.f32.mrf.mxu0
    %v706 = vadd.f32 %v657, %v705
    %707 = vdwg.mxu0
    %v708 = vmax.f32 %v571, 0.0
    %v709 = vmax.f32 %v669, 0.0
    %v710 = vmax.f32 %v573, 0.0
    %v711 = vmax.f32 %v671, 0.0
    %v712 = vmax.f32 %v576, 0.0
    %v713 = vmax.f32 %v674, 0.0
    %v714 = vmax.f32 %v578, 0.0
    %v715 = vmax.f32 %v676, 0.0
    %v716 = vmax.f32 %v581, 0.0
    %v717 = vmax.f32 %v679, 0.0
    %v718 = vmax.f32 %v583, 0.0
    %v719 = vmax.f32 %v681, 0.0
    %v720 = vmax.f32 %v586, 0.0
    %v721 = vmax.f32 %v684, 0.0
    %v722 = vmax.f32 %v588, 0.0
    %v723 = vmax.f32 %v686, 0.0
    %v724 = vmax.f32 %v591, 0.0
    %v725 = vmax.f32 %v689, 0.0
    %v726 = vmax.f32 %v593, 0.0
    %v727 = vmax.f32 %v691, 0.0
    %v728 = vmax.f32 %v596, 0.0
    %v729 = vmax.f32 %v694, 0.0
    %v730 = vmax.f32 %v598, 0.0
    %v731 = vmax.f32 %v696, 0.0
    %v732 = vmax.f32 %v601, 0.0
    %v733 = vmax.f32 %v699, 0.0
    %v734 = vmax.f32 %v603, 0.0
    %v735 = vmax.f32 %v701, 0.0
    %v736 = vmax.f32 %v606, 0.0
    %v737 = vmax.f32 %v704, 0.0
    %v738 = vmax.f32 %v608, 0.0
    %v739 = vmax.f32 %v706, 0.0
    %v740 = vld [vmem:[%s5] sm:$0x3]
    %v741 = vpack.c.bf16 %v710, %v708
    %v742 = vpack.c.bf16 %v711, %v709
    %v743 = vpack.c.bf16 %v714, %v712
    %v744 = vpack.c.bf16 %v715, %v713
    %v745 = vpack.c.bf16 %v718, %v716
    %v746 = vpack.c.bf16 %v719, %v717
    %v747 = vpack.c.bf16 %v722, %v720
    %v748 = vpack.c.bf16 %v723, %v721
    %v749 = vpack.c.bf16 %v726, %v724
    %v750 = vpack.c.bf16 %v727, %v725
    %v751 = vpack.c.bf16 %v730, %v728
    %v752 = vpack.c.bf16 %v731, %v729
    %v753 = vpack.c.bf16 %v734, %v732
    %v754 = vpack.c.bf16 %v735, %v733
    %v755 = vpack.c.bf16 %v738, %v736
    %v756 = vpack.c.bf16 %v739, %v737
    %s757 = sld [smem:[#allocation2]]
    %v758 = vstv %s757
    %760 = vst [vmem:[#allocation1] ss:$9 sm:$0xff] %v740
    %v761 = vld [vmem:[#allocation1] sm:$0xff]
    %v762 = vld [vmem:[#allocation1 + $0x9] sm:$0xff]
    %765 = vmatpush.bf16.xpose.msra.mxu0 %v755
    %766 = vmatpush.bf16.xpose.msra.mxu0 %v753
    %767 = vmatpush.bf16.xpose.msra.mxu0 %v751
    %768 = vmatpush.bf16.xpose.msra.mxu0 %v749
    %769 = vmatpush.bf16.xpose.msra.mxu0 %v747
    %770 = vmatpush.bf16.xpose.msra.mxu0 %v745
    %771 = vmatpush.bf16.xpose.msra.mxu0 %v743
    %772 = vmatpush.bf16.xpose.msra.mxu0 %v741
    %773 = vmatmul.bf16.gmra.mxu0 %v761
    %v774 = vpop.f32.mrf.mxu0
    %v775 = vadd.f32 %v758, %v774
    %v776 = vpop.f32.mrf.mxu0
    %777 = vdwg.mxu0
    %778 = vmatpush.bf16.xpose.msra.mxu0 %v756
    %779 = vmatpush.bf16.xpose.msra.mxu0 %v754
    %780 = vmatpush.bf16.xpose.msra.mxu0 %v752
    %781 = vmatpush.bf16.xpose.msra.mxu0 %v750
    %782 = vmatpush.bf16.xpose.msra.mxu0 %v748
    %783 = vmatpush.bf16.xpose.msra.mxu0 %v746
    %784 = vmatpush.bf16.xpose.msra.mxu0 %v744
    %785 = vmatpush.bf16.xpose.msra.mxu0 %v742
    %786 = vmatmul.bf16.gmra.mxu0 %v762
    %v787 = vpop.f32.mrf.mxu0
    %v788 = vadd.f32 %v775, %v787
    %v789 = vpop.f32.mrf.mxu0
    %790 = vdwg.mxu0
    %791 = vst [vmem:[#allocation6] sm:$0x1] %v788
    // Predicated region
    $region34: #{tpu_custom_call.1} parent=1 // pred_check
      _
    $region35: #{tpu_custom_call.1} parent=1 // pred_check_branch
      %793 = sbr.rel (0) target = $region37
    $region36: #{tpu_custom_call.1} parent=1 // pred_region
      %795 = vsyncadd [#allocation5], 0
      %s797 = sshll.u32 [#allocation6], 4
      %s798 = int_to_ptr.vmem [resolvable:$true] %s797
      %s799 = sshll.u32 %s7, 4
      %s800 = int_to_ptr.hbm [resolvable:$true] %s799
      %802 = dma.vmem_to_hbm [thread:$0]  %s798, 16, %s800, [#allocation5]
    $region37: #{tpu_custom_call.1} parent=1 // pred_fallthru
      _
    // Predicated region
    $region38: #{tpu_custom_call.1} parent=1 // pred_check
      _
    $region39: #{tpu_custom_call.1} parent=1 // pred_check_branch
      %804 = sbr.rel (0) target = $region41
    $region40: #{tpu_custom_call.1} parent=1 // pred_region
      %806 = dma.done [#allocation5], 16
    $region41: #{tpu_custom_call.1} parent=1 // pred_fallthru
      _
    %807 = vsyncpa [#allocation4], 1
    %808 = vsyncpa [#allocation5], 1

</llo_original>
